<compile_context>
chip_gen: v5e
topology: v5e:2x2
jax: 0.10.0
libtpu: 0.0.40
codegen_flags: <defaults>
</compile_context>

<pallas_src>
import functools

import jax
import jax.numpy as jnp
from jax.experimental import pallas as pl
from jax.experimental.pallas import tpu as pltpu


def _round_up(x, m):
    return ((x + m - 1) // m) * m


def _cdiv(a, b):
    return -(-a // b)


# ------------------------------ Pallas kernel ------------------------------ #

def _class_block_kernel(x_ref, w1_ref, b1_ref, w2_ref, b2_ref, o_ref, *,
                        negative_slope):
    """Fused ClassBlock on one row-tile.

    x:  (tile_N, D_pad)  bf16     w1: (D_pad, NB_pad) bf16 (BN scale folded in)
    b1: (1, NB_pad)      f32      (Linear bias + BN shift folded)
    w2: (NB_pad, C_pad)  bf16     b2: (1, C_pad)      f32
    o:  (tile_N, C_pad)  bf16
    """
    # Linear #1 (+ folded BatchNorm1d affine), f32 MXU accumulation.
    h = jnp.dot(x_ref[...], w1_ref[...], preferred_element_type=jnp.float32)
    h = h + b1_ref[...]

    # LeakyReLU(0.1): max(h, a*h) is exact for 0 < a < 1 (one VALU op fewer
    # than compare+select).
    h = jnp.maximum(h, negative_slope * h)

    # TODO(synk): Dropout(p=0.5) -> identity (eval mode).

    # Linear #2 (classifier), bf16 operands, f32 accumulation.
    y = jnp.dot(h.astype(w2_ref.dtype), w2_ref[...],
                preferred_element_type=jnp.float32)
    y = y + b2_ref[...]

    # Sigmoid: exp on the EUP, divide moved to the EUP reciprocal slot.
    y = pl.reciprocal(1.0 + jnp.exp(-y), approx=True)

    o_ref[...] = y.astype(o_ref.dtype)


# ------------------------------- JAX wrapper -------------------------------- #

def make_class_block_forward(params, *, tile_n=1024, eps=1e-5):
    """Folds BN into Linear1, pads & casts weights ONCE, returns a jitted forward.

    Returned callable: x (N, input_dim) f32 -> (N, class_num) f32.
    """
    d, nb = params["w1"].shape          # input_dim, num_bottleneck
    cn = params["w2"].shape[1]          # class_num

    d_pad = _round_up(d, 128)
    nb_pad = _round_up(nb, 128)
    c_pad = _round_up(cn, 128)

    # ---- one-time weight prep (runs eagerly, NOT per forward call) ----
    # Fold BatchNorm1d (eval mode) into the first Linear:
    #   y = (x@W1 + b1 - mean) * gamma/sqrt(var+eps) + beta
    scale = params["bn_gamma"] * jax.lax.rsqrt(params["bn_var"] + eps)
    w1_eff = params["w1"] * scale[None, :]
    b1_eff = (params["b1"] - params["bn_mean"]) * scale + params["bn_beta"]

    w1 = jnp.zeros((d_pad, nb_pad), jnp.bfloat16).at[:d, :nb].set(
        w1_eff.astype(jnp.bfloat16))
    w2 = jnp.zeros((nb_pad, c_pad), jnp.bfloat16).at[:nb, :cn].set(
        params["w2"].astype(jnp.bfloat16))
    b1 = jnp.zeros((1, nb_pad), jnp.float32).at[:, :nb].set(b1_eff[None, :])
    b2 = jnp.zeros((1, c_pad), jnp.float32).at[:, :cn].set(params["b2"][None, :])
    w1, w2, b1, b2 = jax.block_until_ready((w1, w2, b1, b2))

    kernel = functools.partial(_class_block_kernel, negative_slope=0.1)

    def forward(x):
        n, dx = x.shape
        if dx != d:
            raise ValueError(f"expected input_dim={d}, got {dx}")

        # ---- row tiling: big tiles, minimal padding, >=2 grid steps when big ----
        n8 = _round_up(max(n, 1), 8)
        tn = max(8, min(tile_n, n8))
        num_tiles = _cdiv(n8, tn)
        # v7x megacore: give the "parallel" axis >=2 steps when there is enough work.
        if num_tiles == 1 and n8 >= 512:
            num_tiles = 2
        # Re-balance so row padding is <= ~8 rows per tile, not up to tn-1.
        tn = _round_up(_cdiv(n8, num_tiles), 8)
        n_pad = tn * num_tiles

        # ---- activation pad+cast in one fused step; skipped if already aligned ----
        if (n_pad, d_pad) == (n, dx):
            x_bf = x.astype(jnp.bfloat16)
        else:
            x_bf = jnp.zeros((n_pad, d_pad), jnp.bfloat16).at[:n, :dx].set(
                x.astype(jnp.bfloat16))

        out = pl.pallas_call(
            kernel,
            out_shape=jax.ShapeDtypeStruct((n_pad, c_pad), jnp.bfloat16),
            grid_spec=pltpu.PrefetchScalarGridSpec(
                num_scalar_prefetch=0,
                grid=(num_tiles,),
                in_specs=[
                    # pipelined (double-buffered) row tile of x
                    pl.BlockSpec((tn, d_pad), lambda i: (i, 0)),
                    # resident, single-buffered weights/biases (whole array in VMEM)
                    pl.BlockSpec(memory_space=pltpu.MemorySpace.VMEM),  # W1
                    pl.BlockSpec(memory_space=pltpu.MemorySpace.VMEM),  # b1 (folded)
                    pl.BlockSpec(memory_space=pltpu.MemorySpace.VMEM),  # W2
                    pl.BlockSpec(memory_space=pltpu.MemorySpace.VMEM),  # b2
                ],
                out_specs=pl.BlockSpec((tn, c_pad), lambda i: (i, 0)),
            ),
            compiler_params=pltpu.CompilerParams(
                dimension_semantics=("parallel",),
                # plenty for 1024-2048-row tiles; stays under v7x's 64 MiB VMEM
                vmem_limit_bytes=48 * 1024 * 1024,
            ),
        )(x_bf, w1, b1, w2, b2)

        # Slice off row/lane padding; upcast the bf16 writeback to f32.
        return out[:n, :cn].astype(jnp.float32)

    return jax.jit(forward)


# --------------------------- deterministic init ------------------------------ #

def init_params(key, *, input_dim, num_bottleneck=512, class_num=1):
    k1, k2, k3 = jax.random.split(key, 3)
    # add_block Linear: kaiming_normal(a=0, mode='fan_out') -> std = sqrt(2/out_features)
    w1 = (jax.random.normal(k1, (input_dim, num_bottleneck), jnp.float32)
          * jnp.sqrt(2.0 / num_bottleneck))
    b1 = jnp.zeros((num_bottleneck,), jnp.float32)
    # BatchNorm1d: gamma ~ N(1, 0.02), beta = 0; running stats (eval) mean=0, var=1.
    bn_gamma = 1.0 + 0.02 * jax.random.normal(k2, (num_bottleneck,), jnp.float32)
    bn_beta = jnp.zeros((num_bottleneck,), jnp.float32)
    bn_mean = jnp.zeros((num_bottleneck,), jnp.float32)
    bn_var = jnp.ones((num_bottleneck,), jnp.float32)
    # classifier Linear: weight ~ N(0, 0.001), bias = 0.
    w2 = 0.001 * jax.random.normal(k3, (num_bottleneck, class_num), jnp.float32)
    b2 = jnp.zeros((class_num,), jnp.float32)
    return dict(w1=w1, b1=b1,
                bn_gamma=bn_gamma, bn_beta=bn_beta, bn_mean=bn_mean, bn_var=bn_var,
                w2=w2, b2=b2)


def _reference_forward(params, x):
    """Pure-JAX f32 reference for correctness checking."""
    eps = 1e-5
    h = x @ params["w1"] + params["b1"]
    h = (h - params["bn_mean"]) * (params["bn_gamma"]
                                   * jax.lax.rsqrt(params["bn_var"] + eps)) + params["bn_beta"]
    h = jnp.where(h > 0.0, h, 0.1 * h)
    y = h @ params["w2"] + params["b2"]
    return jax.nn.sigmoid(y)


# ----------------------------------- main ------------------------------------ #

if __name__ == "__main__":
    key = jax.random.PRNGKey(0)
    pkey, xkey = jax.random.split(key)

    batch, input_dim, num_bottleneck, class_num = 8, 64, 512, 1
    params = init_params(pkey, input_dim=input_dim,
                         num_bottleneck=num_bottleneck, class_num=class_num)
    x = jax.random.normal(xkey, (batch, input_dim), jnp.float32)

    fwd = make_class_block_forward(params)          # weight fold/pad/cast happens ONCE here
    out = jax.block_until_ready(fwd(x))

    assert out.shape == (batch, class_num)
    assert out.dtype == jnp.float32
    assert bool(jnp.all((out >= 0.0) & (out <= 1.0)))

    ref = _reference_forward(params, x)
    assert bool(jnp.allclose(out, ref, rtol=1e-2, atol=2e-3)), "mismatch vs reference"

    print("KERNEL_OK")
</pallas_src>

<mosaic_0001>
module attributes {stable_mosaic.version = 11 : i64} {
  func.func @_class_block_kernel(%arg0: i32, %arg1: memref<8x128xbf16, #tpu.memory_space<vmem>>, %arg2: memref<128x512xbf16, #tpu.memory_space<vmem>>, %arg3: memref<1x512xf32, #tpu.memory_space<vmem>>, %arg4: memref<512x128xbf16, #tpu.memory_space<vmem>>, %arg5: memref<1x128xf32, #tpu.memory_space<vmem>>, %arg6: memref<8x128xbf16, #tpu.memory_space<vmem>>) attributes {dimension_semantics = [#tpu.dimension_semantics<parallel>], iteration_bounds = array<i64: 1>, scalar_prefetch = 0 : i64, scratch_operands = 0 : i64, tpu.core_type = #tpu.core_type<tc>, window_params = [{transform_indices = @transform_0, window_bounds = array<i64: 8, 128>}, {pipeline_mode = #tpu.pipeline_mode<synchronous>, transform_indices = @transform_1, window_bounds = array<i64: 128, 512>}, {pipeline_mode = #tpu.pipeline_mode<synchronous>, transform_indices = @transform_2, window_bounds = array<i64: 1, 512>}, {pipeline_mode = #tpu.pipeline_mode<synchronous>, transform_indices = @transform_3, window_bounds = array<i64: 512, 128>}, {pipeline_mode = #tpu.pipeline_mode<synchronous>, transform_indices = @transform_4, window_bounds = array<i64: 1, 128>}, {transform_indices = @transform_5, window_bounds = array<i64: 8, 128>}]} {
    %c0 = arith.constant 0 : index
    %c0_0 = arith.constant 0 : index
    %0 = vector.load %arg1[%c0, %c0_0] : memref<8x128xbf16, #tpu.memory_space<vmem>>, vector<8x128xbf16>
    %c0_1 = arith.constant 0 : index
    %c0_2 = arith.constant 0 : index
    %1 = vector.load %arg2[%c0_1, %c0_2] : memref<128x512xbf16, #tpu.memory_space<vmem>>, vector<128x512xbf16>
    %cst = arith.constant dense<0.000000e+00> : vector<8x512xf32>
    %2 = tpu.matmul %0, %1, %cst {dimension_numbers = #tpu.dot_dimension_numbers<[1], [0], [0], [1], [0, 0, 1, 1], [], []>} : vector<8x128xbf16>, vector<128x512xbf16>, vector<8x512xf32> -> vector<8x512xf32>
    %c0_3 = arith.constant 0 : index
    %c0_4 = arith.constant 0 : index
    %3 = vector.load %arg3[%c0_3, %c0_4] : memref<1x512xf32, #tpu.memory_space<vmem>>, vector<1x512xf32>
    %4 = vector.broadcast %3 : vector<1x512xf32> to vector<8x512xf32>
    %5 = arith.addf %2, %4 : vector<8x512xf32>
    %cst_5 = arith.constant 1.000000e-01 : f32
    %6 = vector.broadcast %cst_5 : f32 to vector<8x512xf32>
    %7 = arith.mulf %6, %5 : vector<8x512xf32>
    %8 = arith.maximumf %5, %7 : vector<8x512xf32>
    %9 = arith.truncf %8 : vector<8x512xf32> to vector<8x512xbf16>
    %c0_6 = arith.constant 0 : index
    %c0_7 = arith.constant 0 : index
    %10 = vector.load %arg4[%c0_6, %c0_7] : memref<512x128xbf16, #tpu.memory_space<vmem>>, vector<512x128xbf16>
    %cst_8 = arith.constant dense<0.000000e+00> : vector<8x128xf32>
    %11 = tpu.matmul %9, %10, %cst_8 {dimension_numbers = #tpu.dot_dimension_numbers<[1], [0], [0], [1], [0, 0, 1, 1], [], []>} : vector<8x512xbf16>, vector<512x128xbf16>, vector<8x128xf32> -> vector<8x128xf32>
    %c0_9 = arith.constant 0 : index
    %c0_10 = arith.constant 0 : index
    %12 = vector.load %arg5[%c0_9, %c0_10] : memref<1x128xf32, #tpu.memory_space<vmem>>, vector<1x128xf32>
    %13 = vector.broadcast %12 : vector<1x128xf32> to vector<8x128xf32>
    %14 = arith.addf %11, %13 : vector<8x128xf32>
    %cst_11 = arith.constant 0.000000e+00 : f32
    %15 = vector.broadcast %cst_11 : f32 to vector<8x128xf32>
    %16 = arith.subf %15, %14 : vector<8x128xf32>
    %17 = math.exp %16 : vector<8x128xf32>
    %cst_12 = arith.constant 1.000000e+00 : f32
    %18 = vector.broadcast %cst_12 : f32 to vector<8x128xf32>
    %19 = arith.addf %18, %17 : vector<8x128xf32>
    %20 = tpu.reciprocal %19 {approx = true} : vector<8x128xf32> -> vector<8x128xf32>
    %21 = arith.truncf %20 : vector<8x128xf32> to vector<8x128xbf16>
    %c0_13 = arith.constant 0 : index
    %c0_14 = arith.constant 0 : index
    %22 = vector.load %arg6[%c0_13, %c0_14] : memref<8x128xbf16, #tpu.memory_space<vmem>>, vector<8x128xbf16>
    tpu.vector_store %arg6[%c0_13, %c0_14], %21 {strides = array<i32>} : memref<8x128xbf16, #tpu.memory_space<vmem>>, vector<8x128xbf16>,
    return
  }
  func.func @transform_0(%arg0: i32) -> (i32, i32) {
    %c0_i32 = arith.constant 0 : i32
    %c0_i32_0 = arith.constant 0 : i32
    return %arg0, %c0_i32 : i32, i32
  }
  func.func @transform_1(%arg0: i32) -> (i32, i32) {
    %c0_i32 = arith.constant 0 : i32
    %c0_i32_0 = arith.constant 0 : i32
    %c0_i32_1 = arith.constant 0 : i32
    return %c0_i32, %c0_i32_0 : i32, i32
  }
  func.func @transform_2(%arg0: i32) -> (i32, i32) {
    %c0_i32 = arith.constant 0 : i32
    %c0_i32_0 = arith.constant 0 : i32
    %c0_i32_1 = arith.constant 0 : i32
    return %c0_i32, %c0_i32_0 : i32, i32
  }
  func.func @transform_3(%arg0: i32) -> (i32, i32) {
    %c0_i32 = arith.constant 0 : i32
    %c0_i32_0 = arith.constant 0 : i32
    %c0_i32_1 = arith.constant 0 : i32
    return %c0_i32, %c0_i32_0 : i32, i32
  }
  func.func @transform_4(%arg0: i32) -> (i32, i32) {
    %c0_i32 = arith.constant 0 : i32
    %c0_i32_0 = arith.constant 0 : i32
    %c0_i32_1 = arith.constant 0 : i32
    return %c0_i32, %c0_i32_0 : i32, i32
  }
  func.func @transform_5(%arg0: i32) -> (i32, i32) {
    %c0_i32 = arith.constant 0 : i32
    %c0_i32_0 = arith.constant 0 : i32
    return %arg0, %c0_i32 : i32, i32
  }
}

</mosaic_0001>

<llo_original>
// kernel: forward.1
$region0: #{forward.1}
  #allocation0 [shape = 'u32[]', space=smem, size = 0x4, offset = 0x4, fixed_abs, tag = 'smem constant byte address 0x4 - core index']
  #allocation1 [shape = 'u32[72,128]{1,0:T(1,128)}', space=vmem, size = 0x9000, scoped, tag = 'internal scratch']
  %s0 = inlined_call_operand.vmem [shape: bf16[8,128], index: 0, kind: input, shape index: {}]
  %s1 = inlined_call_operand.hbm [shape: bf16[128,512], index: 1, kind: input, shape index: {}]
  %s2 = inlined_call_operand.vmem [shape: f32[1,512], index: 2, kind: input, shape index: {}]
  %s3 = inlined_call_operand.hbm [shape: bf16[512,128], index: 3, kind: input, shape index: {}]
  %s4 = inlined_call_operand.vmem [shape: f32[1,128], index: 4, kind: input, shape index: {}]
  %s5 = inlined_call_operand.vmem [shape: bf16[8,128], index: 5, kind: output, shape index: {}]
  %s6 = sld [smem:[#allocation0]]
  $region38: #{forward.1} parent=0
    _
  %s8 = ssub.s32 1, %s6
  %s9 = scalar_select 0, %s8, %s6
  $region1: #{forward.1} parent=0
    #allocation2 [shape = 'u8[131072]{0}', space=vmem, size = 0x20000, scoped, tag = 'input window, operand 1, single buffered']
    #allocation3 [shape = 's32[1]{0}', space=sflag, size = 0x4, scoped, tag = 'scoped memory for forward.1']
    #allocation4 [shape = 'u8[131072]{0}', space=vmem, size = 0x20000, scoped, tag = 'input window, operand 3, single buffered']
    #allocation5 [shape = 's32[1]{0}', space=sflag, size = 0x4, scoped, tag = 'scoped memory for forward.1']
    %10 = vsyncpa [#allocation3], 0
    %11 = vsyncpa [#allocation5], 0
    // Predicated region
    $region2: #{forward.1} parent=1 // pred_check
      _
    $region3: #{forward.1} parent=1 // pred_check_branch
      %13 = sbr.rel (0) target = $region5
    $region4: #{forward.1} parent=1 // pred_region
      _
    $region5: #{forward.1} parent=1 // pred_fallthru
      _
    // Predicated region
    $region6: #{forward.1} parent=1 // pred_check
      _
    $region7: #{forward.1} parent=1 // pred_check_branch
      %15 = sbr.rel (0) target = $region9
    $region8: #{forward.1} parent=1 // pred_region
      %17 = vsyncadd [#allocation3], 0
      %s18 = sshll.u32 %s1, 4
      %s19 = int_to_ptr.hbm [resolvable:$true] %s18
      %s20 = sshll.u32 [#allocation2], 4
      %s21 = int_to_ptr.vmem [resolvable:$true] %s20
      %26 = dma.hbm_to_vmem [thread:$0]  %s19, 4096, %s21, [#allocation3], 256, 256, 16
    $region9: #{forward.1} parent=1 // pred_fallthru
      _
    // Predicated region
    $region10: #{forward.1} parent=1 // pred_check
      _
    $region11: #{forward.1} parent=1 // pred_check_branch
      %28 = sbr.rel (0) target = $region13
    $region12: #{forward.1} parent=1 // pred_region
      _
    $region13: #{forward.1} parent=1 // pred_fallthru
      _
    // Predicated region
    $region14: #{forward.1} parent=1 // pred_check
      _
    $region15: #{forward.1} parent=1 // pred_check_branch
      %30 = sbr.rel (0) target = $region17
    $region16: #{forward.1} parent=1 // pred_region
      %32 = vsyncadd [#allocation5], 0
      %s33 = sshll.u32 %s3, 4
      %s34 = int_to_ptr.hbm [resolvable:$true] %s33
      %s35 = sshll.u32 [#allocation4], 4
      %s36 = int_to_ptr.vmem [resolvable:$true] %s35
      %41 = dma.hbm_to_vmem [thread:$0]  %s34, 4096, %s36, [#allocation5], 64, 64, 4
    $region17: #{forward.1} parent=1 // pred_fallthru
      _
    // Predicated region
    $region18: #{forward.1} parent=1 // pred_check
      _
    $region19: #{forward.1} parent=1 // pred_check_branch
      %43 = sbr.rel (0) target = $region21
    $region20: #{forward.1} parent=1 // pred_region
      _
    $region21: #{forward.1} parent=1 // pred_fallthru
      _
    // Predicated region
    $region22: #{forward.1} parent=1 // pred_check
      _
    $region23: #{forward.1} parent=1 // pred_check_branch
      %45 = sbr.rel (0) target = $region25
    $region24: #{forward.1} parent=1 // pred_region
      %47 = dma.done [#allocation3], 4096
    $region25: #{forward.1} parent=1 // pred_fallthru
      _
    // Predicated region
    $region26: #{forward.1} parent=1 // pred_check
      _
    $region27: #{forward.1} parent=1 // pred_check_branch
      %49 = sbr.rel (0) target = $region29
    $region28: #{forward.1} parent=1 // pred_region
      %51 = dma.done [#allocation5], 4096
    $region29: #{forward.1} parent=1 // pred_fallthru
      _
    %v52 = vld [vmem:[%s0] sm:$0xf]
    %v53 = vld [vmem:[#allocation2] sm:$0xff]
    %v54 = vld [vmem:[#allocation2 + $0x8] sm:$0xff]
    %v55 = vld [vmem:[#allocation2 + $0x10] sm:$0xff]
    %v56 = vld [vmem:[#allocation2 + $0x18] sm:$0xff]
    %v57 = vld [vmem:[#allocation2 + $0x20] sm:$0xff]
    %v58 = vld [vmem:[#allocation2 + $0x28] sm:$0xff]
    %v59 = vld [vmem:[#allocation2 + $0x30] sm:$0xff]
    %v60 = vld [vmem:[#allocation2 + $0x38] sm:$0xff]
    %v61 = vld [vmem:[#allocation2 + $0x40] sm:$0xff]
    %v62 = vld [vmem:[#allocation2 + $0x48] sm:$0xff]
    %v63 = vld [vmem:[#allocation2 + $0x50] sm:$0xff]
    %v64 = vld [vmem:[#allocation2 + $0x58] sm:$0xff]
    %v65 = vld [vmem:[#allocation2 + $0x60] sm:$0xff]
    %v66 = vld [vmem:[#allocation2 + $0x68] sm:$0xff]
    %v67 = vld [vmem:[#allocation2 + $0x70] sm:$0xff]
    %v68 = vld [vmem:[#allocation2 + $0x78] sm:$0xff]
    %v69 = vld [vmem:[#allocation2 + $0x80] sm:$0xff]
    %v70 = vld [vmem:[#allocation2 + $0x88] sm:$0xff]
    %v71 = vld [vmem:[#allocation2 + $0x90] sm:$0xff]
    %v72 = vld [vmem:[#allocation2 + $0x98] sm:$0xff]
    %v73 = vld [vmem:[#allocation2 + $0xa0] sm:$0xff]
    %v74 = vld [vmem:[#allocation2 + $0xa8] sm:$0xff]
    %v75 = vld [vmem:[#allocation2 + $0xb0] sm:$0xff]
    %v76 = vld [vmem:[#allocation2 + $0xb8] sm:$0xff]
    %v77 = vld [vmem:[#allocation2 + $0xc0] sm:$0xff]
    %v78 = vld [vmem:[#allocation2 + $0xc8] sm:$0xff]
    %v79 = vld [vmem:[#allocation2 + $0xd0] sm:$0xff]
    %v80 = vld [vmem:[#allocation2 + $0xd8] sm:$0xff]
    %v81 = vld [vmem:[#allocation2 + $0xe0] sm:$0xff]
    %v82 = vld [vmem:[#allocation2 + $0xe8] sm:$0xff]
    %v83 = vld [vmem:[#allocation2 + $0xf0] sm:$0xff]
    %v84 = vld [vmem:[#allocation2 + $0xf8] sm:$0xff]
    %v85 = vld [vmem:[%s2] sm:$0xf]
    %v87 = vperm.slane %v85, 0
    %v88 = vperm.slane %v85, 1
    %v89 = vperm.slane %v85, 2
    %v90 = vperm.slane %v85, 3
    %v127 = vunpack.c.l.b16 %v53
    %v128 = vunpack.c.h.b16 %v53
    %v129 = vunpack.c.l.b16 %v54
    %v130 = vunpack.c.h.b16 %v54
    %v131 = vunpack.c.l.b16 %v55
    %v132 = vunpack.c.h.b16 %v55
    %v133 = vunpack.c.l.b16 %v56
    %v134 = vunpack.c.h.b16 %v56
    %v135 = vunpack.c.l.b16 %v57
    %v136 = vunpack.c.h.b16 %v57
    %v137 = vunpack.c.l.b16 %v58
    %v138 = vunpack.c.h.b16 %v58
    %v139 = vunpack.c.l.b16 %v59
    %v140 = vunpack.c.h.b16 %v59
    %v141 = vunpack.c.l.b16 %v60
    %v142 = vunpack.c.h.b16 %v60
    %v143 = vunpack.c.l.b16 %v61
    %v144 = vunpack.c.h.b16 %v61
    %v145 = vunpack.c.l.b16 %v62
    %v146 = vunpack.c.h.b16 %v62
    %v147 = vunpack.c.l.b16 %v63
    %v148 = vunpack.c.h.b16 %v63
    %v149 = vunpack.c.l.b16 %v64
    %v150 = vunpack.c.h.b16 %v64
    %v151 = vunpack.c.l.b16 %v65
    %v152 = vunpack.c.h.b16 %v65
    %v153 = vunpack.c.l.b16 %v66
    %v154 = vunpack.c.h.b16 %v66
    %v155 = vunpack.c.l.b16 %v67
    %v156 = vunpack.c.h.b16 %v67
    %v157 = vunpack.c.l.b16 %v68
    %v158 = vunpack.c.h.b16 %v68
    %v159 = vunpack.c.l.b16 %v69
    %v160 = vunpack.c.h.b16 %v69
    %v161 = vunpack.c.l.b16 %v70
    %v162 = vunpack.c.h.b16 %v70
    %v163 = vunpack.c.l.b16 %v71
    %v164 = vunpack.c.h.b16 %v71
    %v165 = vunpack.c.l.b16 %v72
    %v166 = vunpack.c.h.b16 %v72
    %v167 = vunpack.c.l.b16 %v73
    %v168 = vunpack.c.h.b16 %v73
    %v169 = vunpack.c.l.b16 %v74
    %v170 = vunpack.c.h.b16 %v74
    %v171 = vunpack.c.l.b16 %v75
    %v172 = vunpack.c.h.b16 %v75
    %v173 = vunpack.c.l.b16 %v76
    %v174 = vunpack.c.h.b16 %v76
    %v175 = vunpack.c.l.b16 %v77
    %v176 = vunpack.c.h.b16 %v77
    %v177 = vunpack.c.l.b16 %v78
    %v178 = vunpack.c.h.b16 %v78
    %v179 = vunpack.c.l.b16 %v79
    %v180 = vunpack.c.h.b16 %v79
    %v181 = vunpack.c.l.b16 %v80
    %v182 = vunpack.c.h.b16 %v80
    %v183 = vunpack.c.l.b16 %v81
    %v184 = vunpack.c.h.b16 %v81
    %v185 = vunpack.c.l.b16 %v82
    %v186 = vunpack.c.h.b16 %v82
    %v187 = vunpack.c.l.b16 %v83
    %v188 = vunpack.c.h.b16 %v83
    %v189 = vunpack.c.l.b16 %v84
    %v190 = vunpack.c.h.b16 %v84
    %v191 = vpack.c.b16 %v131, %v127
    %v192 = vpack.c.b16 %v132, %v128
    %v193 = vpack.c.b16 %v133, %v129
    %v194 = vpack.c.b16 %v134, %v130
    %v195 = vpack.c.b16 %v139, %v135
    %v196 = vpack.c.b16 %v140, %v136
    %v197 = vpack.c.b16 %v141, %v137
    %v198 = vpack.c.b16 %v142, %v138
    %v199 = vpack.c.b16 %v147, %v143
    %v200 = vpack.c.b16 %v148, %v144
    %v201 = vpack.c.b16 %v149, %v145
    %v202 = vpack.c.b16 %v150, %v146
    %v203 = vpack.c.b16 %v155, %v151
    %v204 = vpack.c.b16 %v156, %v152
    %v205 = vpack.c.b16 %v157, %v153
    %v206 = vpack.c.b16 %v158, %v154
    %v207 = vpack.c.b16 %v163, %v159
    %v208 = vpack.c.b16 %v164, %v160
    %v209 = vpack.c.b16 %v165, %v161
    %v210 = vpack.c.b16 %v166, %v162
    %v211 = vpack.c.b16 %v171, %v167
    %v212 = vpack.c.b16 %v172, %v168
    %v213 = vpack.c.b16 %v173, %v169
    %v214 = vpack.c.b16 %v174, %v170
    %v215 = vpack.c.b16 %v179, %v175
    %v216 = vpack.c.b16 %v180, %v176
    %v217 = vpack.c.b16 %v181, %v177
    %v218 = vpack.c.b16 %v182, %v178
    %v219 = vpack.c.b16 %v187, %v183
    %v220 = vpack.c.b16 %v188, %v184
    %v221 = vpack.c.b16 %v189, %v185
    %v222 = vpack.c.b16 %v190, %v186
    %255 = vmatpush.bf16.msra.mxu0 %v219
    %256 = vmatpush.bf16.msra.mxu0 %v215
    %257 = vmatpush.bf16.msra.mxu0 %v211
    %258 = vmatpush.bf16.msra.mxu0 %v207
    %259 = vmatpush.bf16.msra.mxu0 %v203
    %260 = vmatpush.bf16.msra.mxu0 %v199
    %261 = vmatpush.bf16.msra.mxu0 %v195
    %262 = vmatpush.bf16.msra.mxu0 %v191
    %263 = vmatmul.bf16.gmra.mxu0 %v52
    %v264 = vpop.f32.mrf.mxu0
    %v265 = vadd.f32 %v87, %v264
    %v266 = vpop.f32.mrf.mxu0
    %267 = vdwg.mxu0
    %268 = vmatpush.bf16.msra.mxu0 %v220
    %269 = vmatpush.bf16.msra.mxu0 %v216
    %270 = vmatpush.bf16.msra.mxu0 %v212
    %271 = vmatpush.bf16.msra.mxu0 %v208
    %272 = vmatpush.bf16.msra.mxu0 %v204
    %273 = vmatpush.bf16.msra.mxu0 %v200
    %274 = vmatpush.bf16.msra.mxu0 %v196
    %275 = vmatpush.bf16.msra.mxu0 %v192
    %276 = vmatmul.bf16.gmra.mxu0 %v52
    %v277 = vpop.f32.mrf.mxu0
    %v278 = vadd.f32 %v88, %v277
    %v279 = vpop.f32.mrf.mxu0
    %280 = vdwg.mxu0
    %281 = vmatpush.bf16.msra.mxu0 %v221
    %282 = vmatpush.bf16.msra.mxu0 %v217
    %283 = vmatpush.bf16.msra.mxu0 %v213
    %284 = vmatpush.bf16.msra.mxu0 %v209
    %285 = vmatpush.bf16.msra.mxu0 %v205
    %286 = vmatpush.bf16.msra.mxu0 %v201
    %287 = vmatpush.bf16.msra.mxu0 %v197
    %288 = vmatpush.bf16.msra.mxu0 %v193
    %289 = vmatmul.bf16.gmra.mxu0 %v52
    %v290 = vpop.f32.mrf.mxu0
    %v291 = vadd.f32 %v89, %v290
    %v292 = vpop.f32.mrf.mxu0
    %293 = vdwg.mxu0
    %294 = vmatpush.bf16.msra.mxu0 %v222
    %295 = vmatpush.bf16.msra.mxu0 %v218
    %296 = vmatpush.bf16.msra.mxu0 %v214
    %297 = vmatpush.bf16.msra.mxu0 %v210
    %298 = vmatpush.bf16.msra.mxu0 %v206
    %299 = vmatpush.bf16.msra.mxu0 %v202
    %300 = vmatpush.bf16.msra.mxu0 %v198
    %301 = vmatpush.bf16.msra.mxu0 %v194
    %302 = vmatmul.bf16.gmra.mxu0 %v52
    %v303 = vpop.f32.mrf.mxu0
    %v304 = vadd.f32 %v90, %v303
    %v305 = vpop.f32.mrf.mxu0
    %306 = vdwg.mxu0
    %v307 = vmul.f32 %v265, 0.1
    %v308 = vmul.f32 %v278, 0.1
    %v309 = vmul.f32 %v291, 0.1
    %v310 = vmul.f32 %v304, 0.1
    %v311 = vmax.f32 %v265, %v307
    %v312 = vmax.f32 %v278, %v308
    %v313 = vmax.f32 %v291, %v309
    %v314 = vmax.f32 %v304, %v310
    %v315 = vpack.c.bf16 %v311, %v311
    %v316 = vpack.c.bf16 %v312, %v312
    %v317 = vpack.c.bf16 %v313, %v313
    %v318 = vpack.c.bf16 %v314, %v314
    %v319 = vld [vmem:[#allocation4] sm:$0xf]
    %v320 = vld [vmem:[#allocation4 + $0x4] sm:$0xf]
    %v321 = vld [vmem:[#allocation4 + $0x8] sm:$0xf]
    %v322 = vld [vmem:[#allocation4 + $0xc] sm:$0xf]
    %v323 = vld [vmem:[#allocation4 + $0x10] sm:$0xf]
    %v324 = vld [vmem:[#allocation4 + $0x14] sm:$0xf]
    %v325 = vld [vmem:[#allocation4 + $0x18] sm:$0xf]
    %v326 = vld [vmem:[#allocation4 + $0x1c] sm:$0xf]
    %v327 = vld [vmem:[#allocation4 + $0x20] sm:$0xf]
    %v328 = vld [vmem:[#allocation4 + $0x24] sm:$0xf]
    %v329 = vld [vmem:[#allocation4 + $0x28] sm:$0xf]
    %v330 = vld [vmem:[#allocation4 + $0x2c] sm:$0xf]
    %v331 = vld [vmem:[#allocation4 + $0x30] sm:$0xf]
    %v332 = vld [vmem:[#allocation4 + $0x34] sm:$0xf]
    %v333 = vld [vmem:[#allocation4 + $0x38] sm:$0xf]
    %v334 = vld [vmem:[#allocation4 + $0x3c] sm:$0xf]
    %v335 = vld [vmem:[#allocation4 + $0x40] sm:$0xf]
    %v336 = vld [vmem:[#allocation4 + $0x44] sm:$0xf]
    %v337 = vld [vmem:[#allocation4 + $0x48] sm:$0xf]
    %v338 = vld [vmem:[#allocation4 + $0x4c] sm:$0xf]
    %v339 = vld [vmem:[#allocation4 + $0x50] sm:$0xf]
    %v340 = vld [vmem:[#allocation4 + $0x54] sm:$0xf]
    %v341 = vld [vmem:[#allocation4 + $0x58] sm:$0xf]
    %v342 = vld [vmem:[#allocation4 + $0x5c] sm:$0xf]
    %v343 = vld [vmem:[#allocation4 + $0x60] sm:$0xf]
    %v344 = vld [vmem:[#allocation4 + $0x64] sm:$0xf]
    %v345 = vld [vmem:[#allocation4 + $0x68] sm:$0xf]
    %v346 = vld [vmem:[#allocation4 + $0x6c] sm:$0xf]
    %v347 = vld [vmem:[#allocation4 + $0x70] sm:$0xf]
    %v348 = vld [vmem:[#allocation4 + $0x74] sm:$0xf]
    %v349 = vld [vmem:[#allocation4 + $0x78] sm:$0xf]
    %v350 = vld [vmem:[#allocation4 + $0x7c] sm:$0xf]
    %v351 = vld [vmem:[#allocation4 + $0x80] sm:$0xf]
    %v352 = vld [vmem:[#allocation4 + $0x84] sm:$0xf]
    %v353 = vld [vmem:[#allocation4 + $0x88] sm:$0xf]
    %v354 = vld [vmem:[#allocation4 + $0x8c] sm:$0xf]
    %v355 = vld [vmem:[#allocation4 + $0x90] sm:$0xf]
    %v356 = vld [vmem:[#allocation4 + $0x94] sm:$0xf]
    %v357 = vld [vmem:[#allocation4 + $0x98] sm:$0xf]
    %v358 = vld [vmem:[#allocation4 + $0x9c] sm:$0xf]
    %v359 = vld [vmem:[#allocation4 + $0xa0] sm:$0xf]
    %v360 = vld [vmem:[#allocation4 + $0xa4] sm:$0xf]
    %v361 = vld [vmem:[#allocation4 + $0xa8] sm:$0xf]
    %v362 = vld [vmem:[#allocation4 + $0xac] sm:$0xf]
    %v363 = vld [vmem:[#allocation4 + $0xb0] sm:$0xf]
    %v364 = vld [vmem:[#allocation4 + $0xb4] sm:$0xf]
    %v365 = vld [vmem:[#allocation4 + $0xb8] sm:$0xf]
    %v366 = vld [vmem:[#allocation4 + $0xbc] sm:$0xf]
    %v367 = vld [vmem:[#allocation4 + $0xc0] sm:$0xf]
    %v368 = vld [vmem:[#allocation4 + $0xc4] sm:$0xf]
    %v369 = vld [vmem:[#allocation4 + $0xc8] sm:$0xf]
    %v370 = vld [vmem:[#allocation4 + $0xcc] sm:$0xf]
    %v371 = vld [vmem:[#allocation4 + $0xd0] sm:$0xf]
    %v372 = vld [vmem:[#allocation4 + $0xd4] sm:$0xf]
    %v373 = vld [vmem:[#allocation4 + $0xd8] sm:$0xf]
    %v374 = vld [vmem:[#allocation4 + $0xdc] sm:$0xf]
    %v375 = vld [vmem:[#allocation4 + $0xe0] sm:$0xf]
    %v376 = vld [vmem:[#allocation4 + $0xe4] sm:$0xf]
    %v377 = vld [vmem:[#allocation4 + $0xe8] sm:$0xf]
    %v378 = vld [vmem:[#allocation4 + $0xec] sm:$0xf]
    %v379 = vld [vmem:[#allocation4 + $0xf0] sm:$0xf]
    %v380 = vld [vmem:[#allocation4 + $0xf4] sm:$0xf]
    %v381 = vld [vmem:[#allocation4 + $0xf8] sm:$0xf]
    %v382 = vld [vmem:[#allocation4 + $0xfc] sm:$0xf]
    %v383 = vld [vmem:[%s4] sm:$0x1]
    %v385 = vperm.slane %v383, 0
    %v451 = vunpack.c.l.b16 %v319
    %v452 = vunpack.c.l.b16 %v320
    %v453 = vunpack.c.l.b16 %v321
    %v454 = vunpack.c.l.b16 %v322
    %v455 = vunpack.c.l.b16 %v323
    %v456 = vunpack.c.l.b16 %v324
    %v457 = vunpack.c.l.b16 %v325
    %v458 = vunpack.c.l.b16 %v326
    %v459 = vunpack.c.l.b16 %v327
    %v460 = vunpack.c.l.b16 %v328
    %v461 = vunpack.c.l.b16 %v329
    %v462 = vunpack.c.l.b16 %v330
    %v463 = vunpack.c.l.b16 %v331
    %v464 = vunpack.c.l.b16 %v332
    %v465 = vunpack.c.l.b16 %v333
    %v466 = vunpack.c.l.b16 %v334
    %v467 = vunpack.c.l.b16 %v335
    %v468 = vunpack.c.l.b16 %v336
    %v469 = vunpack.c.l.b16 %v337
    %v470 = vunpack.c.l.b16 %v338
    %v471 = vunpack.c.l.b16 %v339
    %v472 = vunpack.c.l.b16 %v340
    %v473 = vunpack.c.l.b16 %v341
    %v474 = vunpack.c.l.b16 %v342
    %v475 = vunpack.c.l.b16 %v343
    %v476 = vunpack.c.l.b16 %v344
    %v477 = vunpack.c.l.b16 %v345
    %v478 = vunpack.c.l.b16 %v346
    %v479 = vunpack.c.l.b16 %v347
    %v480 = vunpack.c.l.b16 %v348
    %v481 = vunpack.c.l.b16 %v349
    %v482 = vunpack.c.l.b16 %v350
    %v483 = vunpack.c.l.b16 %v351
    %v484 = vunpack.c.l.b16 %v352
    %v485 = vunpack.c.l.b16 %v353
    %v486 = vunpack.c.l.b16 %v354
    %v487 = vunpack.c.l.b16 %v355
    %v488 = vunpack.c.l.b16 %v356
    %v489 = vunpack.c.l.b16 %v357
    %v490 = vunpack.c.l.b16 %v358
    %v491 = vunpack.c.l.b16 %v359
    %v492 = vunpack.c.l.b16 %v360
    %v493 = vunpack.c.l.b16 %v361
    %v494 = vunpack.c.l.b16 %v362
    %v495 = vunpack.c.l.b16 %v363
    %v496 = vunpack.c.l.b16 %v364
    %v497 = vunpack.c.l.b16 %v365
    %v498 = vunpack.c.l.b16 %v366
    %v499 = vunpack.c.l.b16 %v367
    %v500 = vunpack.c.l.b16 %v368
    %v501 = vunpack.c.l.b16 %v369
    %v502 = vunpack.c.l.b16 %v370
    %v503 = vunpack.c.l.b16 %v371
    %v504 = vunpack.c.l.b16 %v372
    %v505 = vunpack.c.l.b16 %v373
    %v506 = vunpack.c.l.b16 %v374
    %v507 = vunpack.c.l.b16 %v375
    %v508 = vunpack.c.l.b16 %v376
    %v509 = vunpack.c.l.b16 %v377
    %v510 = vunpack.c.l.b16 %v378
    %v511 = vunpack.c.l.b16 %v379
    %v512 = vunpack.c.l.b16 %v380
    %v513 = vunpack.c.l.b16 %v381
    %v514 = vunpack.c.l.b16 %v382
    %v515 = vpack.c.b16 %v452, %v451
    %v516 = vpack.c.b16 %v454, %v453
    %v517 = vpack.c.b16 %v456, %v455
    %v518 = vpack.c.b16 %v458, %v457
    %v519 = vpack.c.b16 %v460, %v459
    %v520 = vpack.c.b16 %v462, %v461
    %v521 = vpack.c.b16 %v464, %v463
    %v522 = vpack.c.b16 %v466, %v465
    %v523 = vpack.c.b16 %v468, %v467
    %v524 = vpack.c.b16 %v470, %v469
    %v525 = vpack.c.b16 %v472, %v471
    %v526 = vpack.c.b16 %v474, %v473
    %v527 = vpack.c.b16 %v476, %v475
    %v528 = vpack.c.b16 %v478, %v477
    %v529 = vpack.c.b16 %v480, %v479
    %v530 = vpack.c.b16 %v482, %v481
    %v531 = vpack.c.b16 %v484, %v483
    %v532 = vpack.c.b16 %v486, %v485
    %v533 = vpack.c.b16 %v488, %v487
    %v534 = vpack.c.b16 %v490, %v489
    %v535 = vpack.c.b16 %v492, %v491
    %v536 = vpack.c.b16 %v494, %v493
    %v537 = vpack.c.b16 %v496, %v495
    %v538 = vpack.c.b16 %v498, %v497
    %v539 = vpack.c.b16 %v500, %v499
    %v540 = vpack.c.b16 %v502, %v501
    %v541 = vpack.c.b16 %v504, %v503
    %v542 = vpack.c.b16 %v506, %v505
    %v543 = vpack.c.b16 %v508, %v507
    %v544 = vpack.c.b16 %v510, %v509
    %v545 = vpack.c.b16 %v512, %v511
    %v546 = vpack.c.b16 %v514, %v513
    %579 = vmatpush.bf16.msra.mxu0 %v522
    %580 = vmatpush.bf16.msra.mxu0 %v521
    %581 = vmatpush.bf16.msra.mxu0 %v520
    %582 = vmatpush.bf16.msra.mxu0 %v519
    %583 = vmatpush.bf16.msra.mxu0 %v518
    %584 = vmatpush.bf16.msra.mxu0 %v517
    %585 = vmatpush.bf16.msra.mxu0 %v516
    %586 = vmatpush.bf16.msra.mxu0 %v515
    %587 = vmatmul.bf16.gmra.mxu0 %v315
    %v588 = vpop.f32.mrf.mxu0
    %v589 = vadd.f32 %v385, %v588
    %v590 = vpop.f32.mrf.mxu0
    %591 = vdwg.mxu0
    %592 = vmatpush.bf16.msra.mxu0 %v530
    %593 = vmatpush.bf16.msra.mxu0 %v529
    %594 = vmatpush.bf16.msra.mxu0 %v528
    %595 = vmatpush.bf16.msra.mxu0 %v527
    %596 = vmatpush.bf16.msra.mxu0 %v526
    %597 = vmatpush.bf16.msra.mxu0 %v525
    %598 = vmatpush.bf16.msra.mxu0 %v524
    %599 = vmatpush.bf16.msra.mxu0 %v523
    %600 = vmatmul.bf16.gmra.mxu0 %v316
    %v601 = vpop.f32.mrf.mxu0
    %v602 = vadd.f32 %v589, %v601
    %v603 = vpop.f32.mrf.mxu0
    %604 = vdwg.mxu0
    %605 = vmatpush.bf16.msra.mxu0 %v538
    %606 = vmatpush.bf16.msra.mxu0 %v537
    %607 = vmatpush.bf16.msra.mxu0 %v536
    %608 = vmatpush.bf16.msra.mxu0 %v535
    %609 = vmatpush.bf16.msra.mxu0 %v534
    %610 = vmatpush.bf16.msra.mxu0 %v533
    %611 = vmatpush.bf16.msra.mxu0 %v532
    %612 = vmatpush.bf16.msra.mxu0 %v531
    %613 = vmatmul.bf16.gmra.mxu0 %v317
    %v614 = vpop.f32.mrf.mxu0
    %v615 = vadd.f32 %v602, %v614
    %v616 = vpop.f32.mrf.mxu0
    %617 = vdwg.mxu0
    %618 = vmatpush.bf16.msra.mxu0 %v546
    %619 = vmatpush.bf16.msra.mxu0 %v545
    %620 = vmatpush.bf16.msra.mxu0 %v544
    %621 = vmatpush.bf16.msra.mxu0 %v543
    %622 = vmatpush.bf16.msra.mxu0 %v542
    %623 = vmatpush.bf16.msra.mxu0 %v541
    %624 = vmatpush.bf16.msra.mxu0 %v540
    %625 = vmatpush.bf16.msra.mxu0 %v539
    %626 = vmatmul.bf16.gmra.mxu0 %v318
    %v627 = vpop.f32.mrf.mxu0
    %v628 = vadd.f32 %v615, %v627
    %v629 = vpop.f32.mrf.mxu0
    %630 = vdwg.mxu0
    %v631 = vsub.f32 0.0, %v628
    %v632 = vmul.f32 %v631, 1.442695
    %v633 = vpow.pop %v632
    %v634 = vadd.f32 %v633, 1.0
    %v635 = vrcp.pop %v634
    %v636 = vpack.c.bf16 %v635, %v635
    %637 = vst [vmem:[%s5] sm:$0xf] %v636
    // Predicated region
    $region30: #{forward.1} parent=1 // pred_check
      _
    $region31: #{forward.1} parent=1 // pred_check_branch
      %639 = sbr.rel (0) target = $region33
    $region32: #{forward.1} parent=1 // pred_region
      _
    $region33: #{forward.1} parent=1 // pred_fallthru
      _
    // Predicated region
    $region34: #{forward.1} parent=1 // pred_check
      _
    $region35: #{forward.1} parent=1 // pred_check_branch
      %641 = sbr.rel (0) target = $region37
    $region36: #{forward.1} parent=1 // pred_region
      _
    $region37: #{forward.1} parent=1 // pred_fallthru
      _
    %642 = vsyncpa [#allocation3], 1
    %643 = vsyncpa [#allocation5], 1

</llo_original>
